<compile_context>
chip_gen: v7x
topology: tpu7x:2x2x1
jax: 0.10.0
libtpu: 0.0.40
codegen_flags: <defaults>
</compile_context>

<pallas_src>
import functools
import math

import jax
import jax.numpy as jnp
from jax.experimental import pallas as pl
from jax.experimental.pallas import tpu as pltpu


# ---------------------------------------------------------------------------
# tiling helpers
# ---------------------------------------------------------------------------
_TARGET_BLOCK_BYTES = 4 * 1024 * 1024     # ~4 MiB x-blocks: near HBM roofline
_MAX_D_TILE = 2048                        # lane-tile cap (multiple of 128)


def _sublane(dtype):
    # native sublane packing: 8 for f32, 16 for bf16, 32 for int8/fp8
    return max(8, 32 // jnp.dtype(dtype).itemsize)


def _vmem_budget_bytes():
    """Generation-aware VMEM budget for the pipelined working set."""
    cap = 64 * 1024 * 1024
    try:
        info = pltpu.get_tpu_info()
        cap = int(getattr(info, "vmem_capacity_bytes", cap)) or cap
    except Exception:
        pass
    # ~25% headroom for compiler-internal scratch; never ask for more than 96 MiB
    return min((cap * 3) // 4, 96 * 1024 * 1024)


def _pick_d_tile(D):
    """Lane tile: full extent when D <= 128, else a multiple of 128 (last
    feature block may be partial; Pallas masks its loads/stores)."""
    if D <= 128:
        return D
    if D % 128 == 0:
        return min(D, _MAX_D_TILE)
    return min((D // 128) * 128, _MAX_D_TILE)


def _pick_b_tile(B, d_tile, itemsize, sublane, n_streams, budget_bytes):
    """Largest batch tile targeting ~4 MiB blocks under the VMEM budget.

    n_streams = number of (tile_b, d_tile) blocks that get double-buffered
    (2 for apply: x + out; 1 for init: x only)."""
    per_row = max(1, d_tile * itemsize)
    tb = _TARGET_BLOCK_BYTES // per_row
    tb = min(tb, budget_bytes // (2 * n_streams * per_row))
    step = 2 * sublane                        # keep megacore halves aligned
    tb = max(sublane, (tb // step) * step)
    if tb >= B:
        return B                              # full extent: no divisibility rule
    return tb


def _flatten_group(D):
    """Smallest g such that g*D is a multiple of 128 (lane-dense packing)."""
    return 128 // math.gcd(D, 128)


# ---------------------------------------------------------------------------
# encode / decode kernel:  y = (x + bias) * scale   (or the inverse)
# ---------------------------------------------------------------------------
def _actnorm_affine_kernel(x_ref, bias_ref, logs_ref, o_ref, *,
                           inverse, stable_eps, max_scale):
    x = x_ref[...]
    if x.dtype != jnp.float32:
        x = x.astype(jnp.float32)
    bias = bias_ref[...]                       # (1, d_tile) f32
    logs = logs_ref[...]                       # (1, d_tile) f32

    if not inverse:
        if max_scale == 0.0:
            s = jnp.exp(logs) + stable_eps                     # EUP
        else:
            s = jnp.exp(math.log(max_scale) * jnp.tanh(logs))
        o = (x + bias) * s
    else:
        # Reciprocal computed once on the (1, d_tile) scale row: no per-element
        # vector divide (VALU stays free; kernel stays HBM/store-bound).
        if max_scale == 0.0 and stable_eps == 0.0:
            inv = jnp.exp(-logs)                               # exact inverse scale
        elif max_scale == 0.0:
            inv = 1.0 / (jnp.exp(logs) + stable_eps)           # divide on (1,D) only
        else:
            inv = jnp.exp(-math.log(max_scale) * jnp.tanh(logs))
        o = x * inv - bias
    o_ref[...] = o.astype(o_ref.dtype)


@functools.partial(jax.jit, static_argnames=(
    "inverse", "stable_eps", "max_scale", "tile_b", "d_tile"))
def actnorm_apply(x, bias, logs, *, inverse=False, stable_eps=0.0,
                  max_scale=0.0, tile_b=None, d_tile=None):
    """x: (B, D).  bias/logs: (1, D) (or (D,)) f32.  Returns (B, D) in x.dtype."""
    B, D = x.shape
    bias = jnp.reshape(bias, (1, D)).astype(jnp.float32)
    logs = jnp.reshape(logs, (1, D)).astype(jnp.float32)

    # tiny-D fast path: pack g rows per lane-row so every store is lane-dense.
    # (skipped when explicit tile overrides are given -- testing hook)
    flat_g = 0
    if tile_b is None and d_tile is None and 0 < D < 128:
        g = _flatten_group(D)
        if B % g == 0:
            flat_g = g
            x = jnp.reshape(x, (B // g, g * D))   # same element order: free reshape
            bias = jnp.tile(bias, (1, g))
            logs = jnp.tile(logs, (1, g))

    Bk, Dk = x.shape
    itemsize = jnp.dtype(x.dtype).itemsize
    budget = _vmem_budget_bytes()
    dt = d_tile if d_tile is not None else _pick_d_tile(Dk)
    dt = min(dt, Dk)
    tb = tile_b if tile_b is not None else _pick_b_tile(
        Bk, dt, itemsize, _sublane(x.dtype), 2, budget)
    tb = min(tb, Bk)
    grid = (pl.cdiv(Bk, tb), pl.cdiv(Dk, dt))

    kernel = functools.partial(
        _actnorm_affine_kernel, inverse=bool(inverse),
        stable_eps=float(stable_eps), max_scale=float(max_scale))

    out = pl.pallas_call(
        kernel,
        out_shape=jax.ShapeDtypeStruct((Bk, Dk), x.dtype),
        grid=grid,
        in_specs=[
            pl.BlockSpec((tb, dt), lambda i, j: (i, j)),
            pl.BlockSpec((1, dt), lambda i, j: (0, j)),   # constant over batch, tiny
            pl.BlockSpec((1, dt), lambda i, j: (0, j)),
        ],
        out_specs=pl.BlockSpec((tb, dt), lambda i, j: (i, j)),
        compiler_params=pltpu.CompilerParams(
            dimension_semantics=("parallel", "parallel"),
            vmem_limit_bytes=budget),
    )(x, bias, logs)

    if flat_g:
        out = jnp.reshape(out, (B, D))
    return out


# ---------------------------------------------------------------------------
# data-dependent init: true two-pass (mean pass, then mean((x+bias)^2) pass)
# ---------------------------------------------------------------------------
def _actnorm_mean_kernel(x_ref, bias_ref, sum_ref, *, batch, tile_b):
    i = pl.program_id(1)                      # batch-tile axis (innermost)

    @pl.when(i == 0)
    def _():
        sum_ref[...] = jnp.zeros_like(sum_ref)

    x = x_ref[...]
    if x.dtype != jnp.float32:
        x = x.astype(jnp.float32)
    # mask rows past the true batch (partial last batch tile)
    row = i * tile_b + jax.lax.broadcasted_iota(jnp.int32, x.shape, 0)
    x = jnp.where(row < batch, x, 0.0)
    sum_ref[...] += jnp.sum(x, axis=0, keepdims=True)

    @pl.when(i == pl.num_programs(1) - 1)
    def _():
        bias_ref[...] = -(sum_ref[...] * jnp.float32(1.0 / batch))


def _actnorm_var_kernel(x_ref, bias_ref, logs_ref, sq_ref, *,
                        batch, tile_b, scale):
    i = pl.program_id(1)

    @pl.when(i == 0)
    def _():
        sq_ref[...] = jnp.zeros_like(sq_ref)

    x = x_ref[...]
    if x.dtype != jnp.float32:
        x = x.astype(jnp.float32)
    c = x + bias_ref[...]
    row = i * tile_b + jax.lax.broadcasted_iota(jnp.int32, c.shape, 0)
    c = jnp.where(row < batch, c, 0.0)
    sq_ref[...] += jnp.sum(c * c, axis=0, keepdims=True)

    @pl.when(i == pl.num_programs(1) - 1)
    def _():
        var = sq_ref[...] * jnp.float32(1.0 / batch)
        logs_ref[...] = jnp.log(jnp.float32(scale) / (jnp.sqrt(var) + 1e-6))


@functools.partial(jax.jit, static_argnames=("scale", "tile_b", "d_tile"))
def actnorm_init(x, *, scale=1.0, tile_b=None, d_tile=None):
    """Two-pass init matching ActNorm.initialize_parameters.
    Returns (bias, logs), each (1, D) float32."""
    B, D = x.shape
    itemsize = jnp.dtype(x.dtype).itemsize
    budget = _vmem_budget_bytes()
    dt = d_tile if d_tile is not None else _pick_d_tile(D)
    dt = min(dt, D)
    # only x is pipelined (outputs/scratch are (1, dt)): 1 stream -> bigger tile
    tb = tile_b if tile_b is not None else _pick_b_tile(
        B, dt, itemsize, _sublane(x.dtype), 1, budget)
    tb = min(tb, B)
    grid = (pl.cdiv(D, dt), pl.cdiv(B, tb))   # (feature: parallel, batch: reduce)

    cparams = pltpu.CompilerParams(
        dimension_semantics=("parallel", "arbitrary"),
        vmem_limit_bytes=budget)

    # pass 1: bias = -mean(x, axis=0)
    bias = pl.pallas_call(
        functools.partial(_actnorm_mean_kernel, batch=B, tile_b=tb),
        out_shape=jax.ShapeDtypeStruct((1, D), jnp.float32),
        grid=grid,
        in_specs=[pl.BlockSpec((tb, dt), lambda j, i: (i, j))],
        out_specs=pl.BlockSpec((1, dt), lambda j, i: (0, j)),
        scratch_shapes=[pltpu.VMEM((1, dt), jnp.float32)],
        compiler_params=cparams,
    )(x)

    # pass 2: logs = log(scale / (sqrt(mean((x + bias)^2, axis=0)) + 1e-6))
    logs = pl.pallas_call(
        functools.partial(_actnorm_var_kernel, batch=B, tile_b=tb,
                          scale=float(scale)),
        out_shape=jax.ShapeDtypeStruct((1, D), jnp.float32),
        grid=grid,
        in_specs=[pl.BlockSpec((tb, dt), lambda j, i: (i, j)),
                  pl.BlockSpec((1, dt), lambda j, i: (0, j))],
        out_specs=pl.BlockSpec((1, dt), lambda j, i: (0, j)),
        scratch_shapes=[pltpu.VMEM((1, dt), jnp.float32)],
        compiler_params=cparams,
    )(x, bias)

    return bias, logs


# ---------------------------------------------------------------------------
# Python wrapper mirroring the PyTorch module's behaviour/state.
# ---------------------------------------------------------------------------
class ActNorm:
    def __init__(self, data_dim, scale=1.0, max_scale=0, actnorm_eps=0):
        self.num_features = data_dim
        self.bias = jnp.zeros((1, data_dim), jnp.float32)
        self.logs = jnp.zeros((1, data_dim), jnp.float32)
        self.scale = scale
        self.max_scale = max_scale
        self.stable_eps = actnorm_eps
        self.inited = False

    def initialize_parameters(self, x):
        self.bias, self.logs = actnorm_init(x, scale=float(self.scale))
        self.inited = True

    def forward(self, x, inverse=False):
        if not self.inited:
            self.initialize_parameters(x)
        return actnorm_apply(x, self.bias, self.logs, inverse=inverse,
                             stable_eps=float(self.stable_eps),
                             max_scale=float(self.max_scale))

    __call__ = forward


# ---------------------------------------------------------------------------
# Pure-JAX reference of the PyTorch semantics (for correctness checking).
# ---------------------------------------------------------------------------
def _ref_init(x, scale=1.0):
    bias = -jnp.mean(x, axis=0, keepdims=True)
    var = jnp.mean((x + bias) ** 2, axis=0, keepdims=True)
    logs = jnp.log(scale / (jnp.sqrt(var) + 1e-6))
    return bias, logs


def _ref_encode(x, bias, logs, stable_eps=0.0):
    return (x + bias) * (jnp.exp(logs) + stable_eps)


if __name__ == "__main__":
    key = jax.random.PRNGKey(0)
    k1, k2, k3 = jax.random.split(key, 3)

    # case 1: tiny-D lane-dense fast path through the module wrapper (B=16, D=8)
    x = 3.0 + 2.0 * jax.random.normal(k1, (16, 8), jnp.float32)
    layer = ActNorm(8)
    y = jax.block_until_ready(layer(x))          # init + encode
    assert y.shape == (16, 8), y.shape
    bias_ref, logs_ref = _ref_init(x)
    y_ref = _ref_encode(x, bias_ref, logs_ref)
    assert jnp.allclose(layer.bias, bias_ref, atol=1e-5, rtol=1e-5), (
        float(jnp.max(jnp.abs(layer.bias - bias_ref))))
    assert jnp.allclose(layer.logs, logs_ref, atol=1e-5, rtol=1e-5), (
        float(jnp.max(jnp.abs(layer.logs - logs_ref))))
    assert jnp.allclose(y, y_ref, atol=1e-5, rtol=1e-5), (
        float(jnp.max(jnp.abs(y - y_ref))))
    x_rec = jax.block_until_ready(layer(y, inverse=True))
    assert jnp.allclose(x_rec, x, atol=1e-4, rtol=1e-4), (
        float(jnp.max(jnp.abs(x_rec - x))))

    # case 2: forced small batch tile -> partial batch tiles + masked init rows
    x2 = 1.0 + 0.5 * jax.random.normal(k2, (20, 8), jnp.float32)
    b2, l2 = actnorm_init(x2, tile_b=8)
    y2 = actnorm_apply(x2, b2, l2, tile_b=8)
    br2, lr2 = _ref_init(x2)
    assert jnp.allclose(b2, br2, atol=1e-5, rtol=1e-5)
    assert jnp.allclose(l2, lr2, atol=1e-5, rtol=1e-5)
    assert jnp.allclose(y2, _ref_encode(x2, br2, lr2), atol=1e-5, rtol=1e-5)
    x2r = jax.block_until_ready(actnorm_apply(y2, b2, l2, inverse=True, tile_b=8))
    assert jnp.allclose(x2r, x2, atol=1e-4, rtol=1e-4)

    # case 3: D > 128, not a multiple of 128 -> lane-tiled with masked last block
    x3 = -2.0 + 1.5 * jax.random.normal(k3, (10, 200), jnp.float32)
    b3, l3 = actnorm_init(x3)
    y3 = jax.block_until_ready(actnorm_apply(x3, b3, l3))
    br3, lr3 = _ref_init(x3)
    assert jnp.allclose(b3, br3, atol=1e-5, rtol=1e-5)
    assert jnp.allclose(l3, lr3, atol=1e-5, rtol=1e-5)
    assert jnp.allclose(y3, _ref_encode(x3, br3, lr3), atol=1e-5, rtol=1e-5)

    print("KERNEL_OK")
</pallas_src>

<mosaic_0001>
module attributes {stable_mosaic.version = 11 : i64} {
  func.func @_actnorm_mean_kernel(%arg0: i32, %arg1: i32, %arg2: memref<16x8xf32, #tpu.memory_space<vmem>>, %arg3: memref<1x8xf32, #tpu.memory_space<vmem>>, %arg4: memref<1x8xf32, #tpu.memory_space<vmem>>) attributes {dimension_semantics = [#tpu.dimension_semantics<parallel>, #tpu.dimension_semantics<arbitrary>], iteration_bounds = array<i64: 1, 1>, scalar_prefetch = 0 : i64, scratch_operands = 1 : i64, tpu.core_type = #tpu.core_type<tc>, window_params = [{transform_indices = @transform_0, window_bounds = array<i64: 16, 8>}, {transform_indices = @transform_1, window_bounds = array<i64: 1, 8>}]} {
    %c0_i32 = arith.constant 0 : i32
    %0 = arith.cmpi eq, %arg1, %c0_i32 : i32
    %1 = arith.extui %0 : i1 to i32
    %c0_i32_0 = arith.constant 0 : i32
    %2 = arith.cmpi ne, %1, %c0_i32_0 : i32
    scf.if %2 {
      %cst_10 = arith.constant 0.000000e+00 : f32
      %20 = vector.broadcast %cst_10 : f32 to vector<1x8xf32>
      %c0_11 = arith.constant 0 : index
      %c0_12 = arith.constant 0 : index
      %21 = vector.load %arg4[%c0_11, %c0_12] : memref<1x8xf32, #tpu.memory_space<vmem>>, vector<1x8xf32>
      tpu.vector_store %arg4[%c0_11, %c0_12], %20 {strides = array<i32>} : memref<1x8xf32, #tpu.memory_space<vmem>>, vector<1x8xf32>,
    } else {
    }
    %c0 = arith.constant 0 : index
    %c0_1 = arith.constant 0 : index
    %3 = vector.load %arg2[%c0, %c0_1] : memref<16x8xf32, #tpu.memory_space<vmem>>, vector<16x8xf32>
    %c16_i32 = arith.constant 16 : i32
    %4 = arith.muli %arg1, %c16_i32 : i32
    %5 = tpu.iota {dimensions = array<i32: 0>} : vector<16x8xi32>
    %6 = vector.broadcast %4 : i32 to vector<16x8xi32>
    %7 = arith.addi %6, %5 : vector<16x8xi32>
    %c16_i32_2 = arith.constant 16 : i32
    %8 = vector.broadcast %c16_i32_2 : i32 to vector<16x8xi32>
    %9 = arith.cmpi slt, %7, %8 : vector<16x8xi32>
    %cst = arith.constant 0.000000e+00 : f32
    %10 = vector.broadcast %cst : f32 to vector<16x8xf32>
    %11 = arith.select %9, %3, %10 : vector<16x8xi1>, vector<16x8xf32>
    %c0_3 = arith.constant 0 : index
    %c0_4 = arith.constant 0 : index
    %12 = vector.load %arg4[%c0_3, %c0_4] : memref<1x8xf32, #tpu.memory_space<vmem>>, vector<1x8xf32>
    %cst_5 = arith.constant dense<0.000000e+00> : vector<8xf32>
    %13 = vector.multi_reduction <add>, %11, %cst_5 [0] : vector<16x8xf32> to vector<8xf32>
    %14 = vector.shape_cast %13 : vector<8xf32> to vector<1x8xf32>
    %15 = arith.addf %12, %14 : vector<1x8xf32>
    %c0_6 = arith.constant 0 : index
    %c0_7 = arith.constant 0 : index
    %16 = vector.load %arg4[%c0_6, %c0_7] : memref<1x8xf32, #tpu.memory_space<vmem>>, vector<1x8xf32>
    tpu.vector_store %arg4[%c0_6, %c0_7], %15 {strides = array<i32>} : memref<1x8xf32, #tpu.memory_space<vmem>>, vector<1x8xf32>,
    %c0_i32_8 = arith.constant 0 : i32
    %17 = arith.cmpi eq, %arg1, %c0_i32_8 : i32
    %18 = arith.extui %17 : i1 to i32
    %c0_i32_9 = arith.constant 0 : i32
    %19 = arith.cmpi ne, %18, %c0_i32_9 : i32
    scf.if %19 {
      %c0_10 = arith.constant 0 : index
      %c0_11 = arith.constant 0 : index
      %20 = vector.load %arg4[%c0_10, %c0_11] : memref<1x8xf32, #tpu.memory_space<vmem>>, vector<1x8xf32>
      %cst_12 = arith.constant 6.250000e-02 : f32
      %21 = vector.broadcast %cst_12 : f32 to vector<1x8xf32>
      %22 = arith.mulf %20, %21 : vector<1x8xf32>
      %cst_13 = arith.constant 0.000000e+00 : f32
      %23 = vector.broadcast %cst_13 : f32 to vector<1x8xf32>
      %24 = arith.subf %23, %22 : vector<1x8xf32>
      %c0_14 = arith.constant 0 : index
      %c0_15 = arith.constant 0 : index
      %25 = vector.load %arg3[%c0_14, %c0_15] : memref<1x8xf32, #tpu.memory_space<vmem>>, vector<1x8xf32>
      tpu.vector_store %arg3[%c0_14, %c0_15], %24 {strides = array<i32>} : memref<1x8xf32, #tpu.memory_space<vmem>>, vector<1x8xf32>,
    } else {
    }
    return
  }
  func.func @transform_0(%arg0: i32, %arg1: i32) -> (i32, i32) {
    %c0_i32 = arith.constant 0 : i32
    return %arg1, %arg0 : i32, i32
  }
  func.func @transform_1(%arg0: i32, %arg1: i32) -> (i32, i32) {
    %c0_i32 = arith.constant 0 : i32
    %c0_i32_0 = arith.constant 0 : i32
    return %c0_i32, %arg0 : i32, i32
  }
}

module attributes {stable_mosaic.version = 11 : i64} {
  func.func @_actnorm_var_kernel(%arg0: i32, %arg1: i32, %arg2: memref<16x8xf32, #tpu.memory_space<vmem>>, %arg3: memref<1x8xf32, #tpu.memory_space<vmem>>, %arg4: memref<1x8xf32, #tpu.memory_space<vmem>>, %arg5: memref<1x8xf32, #tpu.memory_space<vmem>>) attributes {dimension_semantics = [#tpu.dimension_semantics<parallel>, #tpu.dimension_semantics<arbitrary>], iteration_bounds = array<i64: 1, 1>, scalar_prefetch = 0 : i64, scratch_operands = 1 : i64, tpu.core_type = #tpu.core_type<tc>, window_params = [{transform_indices = @transform_0, window_bounds = array<i64: 16, 8>}, {transform_indices = @transform_1, window_bounds = array<i64: 1, 8>}, {transform_indices = @transform_2, window_bounds = array<i64: 1, 8>}]} {
    %c0_i32 = arith.constant 0 : i32
    %0 = arith.cmpi eq, %arg1, %c0_i32 : i32
    %1 = arith.extui %0 : i1 to i32
    %c0_i32_0 = arith.constant 0 : i32
    %2 = arith.cmpi ne, %1, %c0_i32_0 : i32
    scf.if %2 {
      %cst_12 = arith.constant 0.000000e+00 : f32
      %24 = vector.broadcast %cst_12 : f32 to vector<1x8xf32>
      %c0_13 = arith.constant 0 : index
      %c0_14 = arith.constant 0 : index
      %25 = vector.load %arg5[%c0_13, %c0_14] : memref<1x8xf32, #tpu.memory_space<vmem>>, vector<1x8xf32>
      tpu.vector_store %arg5[%c0_13, %c0_14], %24 {strides = array<i32>} : memref<1x8xf32, #tpu.memory_space<vmem>>, vector<1x8xf32>,
    } else {
    }
    %c0 = arith.constant 0 : index
    %c0_1 = arith.constant 0 : index
    %3 = vector.load %arg2[%c0, %c0_1] : memref<16x8xf32, #tpu.memory_space<vmem>>, vector<16x8xf32>
    %c0_2 = arith.constant 0 : index
    %c0_3 = arith.constant 0 : index
    %4 = vector.load %arg3[%c0_2, %c0_3] : memref<1x8xf32, #tpu.memory_space<vmem>>, vector<1x8xf32>
    %5 = vector.broadcast %4 : vector<1x8xf32> to vector<16x8xf32>
    %6 = arith.addf %3, %5 : vector<16x8xf32>
    %c16_i32 = arith.constant 16 : i32
    %7 = arith.muli %arg1, %c16_i32 : i32
    %8 = tpu.iota {dimensions = array<i32: 0>} : vector<16x8xi32>
    %9 = vector.broadcast %7 : i32 to vector<16x8xi32>
    %10 = arith.addi %9, %8 : vector<16x8xi32>
    %c16_i32_4 = arith.constant 16 : i32
    %11 = vector.broadcast %c16_i32_4 : i32 to vector<16x8xi32>
    %12 = arith.cmpi slt, %10, %11 : vector<16x8xi32>
    %cst = arith.constant 0.000000e+00 : f32
    %13 = vector.broadcast %cst : f32 to vector<16x8xf32>
    %14 = arith.select %12, %6, %13 : vector<16x8xi1>, vector<16x8xf32>
    %c0_5 = arith.constant 0 : index
    %c0_6 = arith.constant 0 : index
    %15 = vector.load %arg5[%c0_5, %c0_6] : memref<1x8xf32, #tpu.memory_space<vmem>>, vector<1x8xf32>
    %16 = arith.mulf %14, %14 : vector<16x8xf32>
    %cst_7 = arith.constant dense<0.000000e+00> : vector<8xf32>
    %17 = vector.multi_reduction <add>, %16, %cst_7 [0] : vector<16x8xf32> to vector<8xf32>
    %18 = vector.shape_cast %17 : vector<8xf32> to vector<1x8xf32>
    %19 = arith.addf %15, %18 : vector<1x8xf32>
    %c0_8 = arith.constant 0 : index
    %c0_9 = arith.constant 0 : index
    %20 = vector.load %arg5[%c0_8, %c0_9] : memref<1x8xf32, #tpu.memory_space<vmem>>, vector<1x8xf32>
    tpu.vector_store %arg5[%c0_8, %c0_9], %19 {strides = array<i32>} : memref<1x8xf32, #tpu.memory_space<vmem>>, vector<1x8xf32>,
    %c0_i32_10 = arith.constant 0 : i32
    %21 = arith.cmpi eq, %arg1, %c0_i32_10 : i32
    %22 = arith.extui %21 : i1 to i32
    %c0_i32_11 = arith.constant 0 : i32
    %23 = arith.cmpi ne, %22, %c0_i32_11 : i32
    scf.if %23 {
      %c0_12 = arith.constant 0 : index
      %c0_13 = arith.constant 0 : index
      %24 = vector.load %arg5[%c0_12, %c0_13] : memref<1x8xf32, #tpu.memory_space<vmem>>, vector<1x8xf32>
      %cst_14 = arith.constant 6.250000e-02 : f32
      %25 = vector.broadcast %cst_14 : f32 to vector<1x8xf32>
      %26 = arith.mulf %24, %25 : vector<1x8xf32>
      %27 = math.sqrt %26 : vector<1x8xf32>
      %cst_15 = arith.constant 9.99999997E-7 : f32
      %28 = vector.broadcast %cst_15 : f32 to vector<1x8xf32>
      %29 = arith.addf %27, %28 : vector<1x8xf32>
      %cst_16 = arith.constant 1.000000e+00 : f32
      %30 = vector.broadcast %cst_16 : f32 to vector<1x8xf32>
      %31 = arith.divf %30, %29 : vector<1x8xf32>
      %32 = math.log %31 : vector<1x8xf32>
      %c0_17 = arith.constant 0 : index
      %c0_18 = arith.constant 0 : index
      %33 = vector.load %arg4[%c0_17, %c0_18] : memref<1x8xf32, #tpu.memory_space<vmem>>, vector<1x8xf32>
      tpu.vector_store %arg4[%c0_17, %c0_18], %32 {strides = array<i32>} : memref<1x8xf32, #tpu.memory_space<vmem>>, vector<1x8xf32>,
    } else {
    }
    return
  }
  func.func @transform_0(%arg0: i32, %arg1: i32) -> (i32, i32) {
    %c0_i32 = arith.constant 0 : i32
    return %arg1, %arg0 : i32, i32
  }
  func.func @transform_1(%arg0: i32, %arg1: i32) -> (i32, i32) {
    %c0_i32 = arith.constant 0 : i32
    %c0_i32_0 = arith.constant 0 : i32
    return %c0_i32, %arg0 : i32, i32
  }
  func.func @transform_2(%arg0: i32, %arg1: i32) -> (i32, i32) {
    %c0_i32 = arith.constant 0 : i32
    %c0_i32_0 = arith.constant 0 : i32
    return %c0_i32, %arg0 : i32, i32
  }
}

</mosaic_0001>

<llo_original>
// kernel: actnorm_init.2
$region0: #{actnorm_init.2}
  #allocation0 [shape = 'u32[]', space=smem, size = 0x4, offset = 0x4, fixed_abs, tag = 'smem constant byte address 0x4 - core index']
  #allocation1 [shape = 'u32[144,128]{1,0:T(1,128)}', space=vmem, size = 0x12000, scoped, tag = 'internal scratch']
  #allocation2 [shape = 'f32[1,8]{1,0:T(1,128)}', space=vmem, size = 0x200, scoped, tag = 'scratch operand']
  %s0 = inlined_call_operand.vmem [shape: f32[16,8], index: 0, kind: input, shape index: {}]
  %s1 = inlined_call_operand.vmem [shape: f32[1,8], index: 1, kind: output, shape index: {}]
  %s2 = sld [smem:[#allocation0]]
  $region22: #{actnorm_init.2} parent=0
    _
  %s4 = ssub.s32 1, %s2
  %s5 = scalar_select 0, %s4, %s2
  // Predicated region
  $region2: #{actnorm_init.2} parent=0 // pred_check
    _
  $region3: #{actnorm_init.2} parent=0 // pred_check_branch
    %7 = sbr.rel (0) target = $region5
  $region4: #{actnorm_init.2} parent=0 // pred_region
    _
  $region5: #{actnorm_init.2} parent=0 // pred_fallthru
    _
  %p8 = scmp.eq.s32.totalorder 0, 0
  // Predicated region
  $region6: #{actnorm_init.2} parent=0 // pred_check
    %p9 = pneg %p8
  $region7: #{actnorm_init.2} parent=0 // pred_check_branch
    %11 = sbr.rel (%p9) target = $region9
  $region8: #{actnorm_init.2} parent=0 // pred_region
    %vm12 = vcmask 57344
    %13 = vst.msk [vmem:[#allocation2] sm:$0x1] %vm12, 0.0
  $region9: #{actnorm_init.2} parent=0 // pred_fallthru
    _
  %v14 = vld [vmem:[%s0] sm:$0xff]
  %v15 = vld [vmem:[%s0 + $0x8] sm:$0xff]
  %s16 = smul.u32 0, 16
  %v17 = vlaneseq
  %v18 = vshrl.u32 %v17, 7
  %v19 = vadd.s32 %v18, 8
  %v20 = vstv %s16
  %v21 = vadd.s32 %v20, %v18
  %v22 = vadd.s32 %v20, %v19
  %vm23 = vcmp.lt.s32.totalorder %v21, 16
  %vm24 = vcmp.lt.s32.totalorder %v22, 16
  %v25 = vsel %vm23, %v14, 0.0
  %v26 = vsel %vm24, %v15, 0.0
  %v27 = vld [vmem:[#allocation2] sm:$0x1]
  %vm28 = vcmask 64512
  %v29 = vsel %vm28, %v25, 0.0
  %v30 = vsel %vm28, %v26, 0.0
  %v31 = vadd.f32 %v29, %v30
  %v32 = vrot.slane %v31, 4
  %v33 = vadd.f32 %v31, %v32
  %v34 = vrot.slane %v33, 2
  %v35 = vadd.f32 %v33, %v34
  %v36 = vrot.slane %v35, 1
  %v37 = vadd.f32 %v35, %v36
  %v38 = vadd.f32 %v27, %v37
  %vm39 = vcmask 57344
  %40 = vst.msk [vmem:[#allocation2] sm:$0x1] %vm39, %v38
  // Predicated region
  $region10: #{actnorm_init.2} parent=0 // pred_check
    %p41 = pneg %p8
  $region11: #{actnorm_init.2} parent=0 // pred_check_branch
    %43 = sbr.rel (%p41) target = $region13
  $region12: #{actnorm_init.2} parent=0 // pred_region
    %v44 = vld [vmem:[#allocation2] sm:$0x1]
    %v45 = vmul.f32 %v44, 0.0625
    %v46 = vsub.f32 0.0, %v45
    %47 = vst.msk [vmem:[%s1] sm:$0x1] %vm39, %v46
  $region13: #{actnorm_init.2} parent=0 // pred_fallthru
    _
  // Predicated region
  $region14: #{actnorm_init.2} parent=0 // pred_check
    _
  $region15: #{actnorm_init.2} parent=0 // pred_check_branch
    %49 = sbr.rel (0) target = $region17
  $region16: #{actnorm_init.2} parent=0 // pred_region
    _
  $region17: #{actnorm_init.2} parent=0 // pred_fallthru
    _
  // Predicated region
  $region18: #{actnorm_init.2} parent=0 // pred_check
    _
  $region19: #{actnorm_init.2} parent=0 // pred_check_branch
    %51 = sbr.rel (0) target = $region21
  $region20: #{actnorm_init.2} parent=0 // pred_region
    _
  $region21: #{actnorm_init.2} parent=0 // pred_fallthru
    _

// kernel: actnorm_init.3
$region0: #{actnorm_init.3}
  #allocation0 [shape = 'u32[]', space=smem, size = 0x4, offset = 0x4, fixed_abs, tag = 'smem constant byte address 0x4 - core index']
  #allocation1 [shape = 'u32[144,128]{1,0:T(1,128)}', space=vmem, size = 0x12000, scoped, tag = 'internal scratch']
  #allocation2 [shape = 'f32[1,8]{1,0:T(1,128)}', space=vmem, size = 0x200, scoped, tag = 'scratch operand']
  %s0 = inlined_call_operand.vmem [shape: f32[16,8], index: 0, kind: input, shape index: {}]
  %s1 = inlined_call_operand.vmem [shape: f32[1,8], index: 1, kind: input, shape index: {}]
  %s2 = inlined_call_operand.hbm [shape: f32[1,8], index: 2, kind: output, shape index: {}]
  %s3 = sld [smem:[#allocation0]]
  $region26: #{actnorm_init.3} parent=0
    _
  %s5 = ssub.s32 1, %s3
  %s6 = scalar_select 0, %s5, %s3
  $region1: #{actnorm_init.3} parent=0
    #allocation3 [shape = 'u8[512]{0}', space=vmem, size = 0x400, scoped, tag = 'output window, operand 0, single buffered']
    #allocation4 [shape = 's32[1]{0}', space=sflag, size = 0x4, scoped, tag = 'scoped memory for actnorm_init.3']
    %7 = vsyncpa [#allocation4], 0
    // Predicated region
    $region2: #{actnorm_init.3} parent=1 // pred_check
      _
    $region3: #{actnorm_init.3} parent=1 // pred_check_branch
      %9 = sbr.rel (0) target = $region5
    $region4: #{actnorm_init.3} parent=1 // pred_region
      _
    $region5: #{actnorm_init.3} parent=1 // pred_fallthru
      _
    // Predicated region
    $region6: #{actnorm_init.3} parent=1 // pred_check
      _
    $region7: #{actnorm_init.3} parent=1 // pred_check_branch
      %11 = sbr.rel (0) target = $region9
    $region8: #{actnorm_init.3} parent=1 // pred_region
      _
    $region9: #{actnorm_init.3} parent=1 // pred_fallthru
      _
    %p12 = scmp.eq.s32.totalorder 0, 0
    // Predicated region
    $region10: #{actnorm_init.3} parent=1 // pred_check
      %p13 = pneg %p12
    $region11: #{actnorm_init.3} parent=1 // pred_check_branch
      %15 = sbr.rel (%p13) target = $region13
    $region12: #{actnorm_init.3} parent=1 // pred_region
      %vm16 = vcmask 57344
      %17 = vst.msk [vmem:[#allocation2] sm:$0x1] %vm16, 0.0
    $region13: #{actnorm_init.3} parent=1 // pred_fallthru
      _
    %v18 = vld [vmem:[%s0] sm:$0xff]
    %v19 = vld [vmem:[%s0 + $0x8] sm:$0xff]
    %v20 = vld [vmem:[%s1] sm:$0x1]
    %v22 = vlaneseq
    %v23 = vshrl.u32 %v22, 7
    %v24 = vsub.s32 0, %v23
    %v25 = vrot.slane %v20, %v24
    %v27 = vadd.f32 %v18, %v25
    %v28 = vadd.f32 %v19, %v25
    %s29 = smul.u32 0, 16
    %v30 = vlaneseq
    %v31 = vshrl.u32 %v30, 7
    %v32 = vadd.s32 %v31, 8
    %v33 = vstv %s29
    %v34 = vadd.s32 %v33, %v31
    %v35 = vadd.s32 %v33, %v32
    %vm36 = vcmp.lt.s32.totalorder %v34, 16
    %vm37 = vcmp.lt.s32.totalorder %v35, 16
    %v38 = vsel %vm36, %v27, 0.0
    %v39 = vsel %vm37, %v28, 0.0
    %v40 = vld [vmem:[#allocation2] sm:$0x1]
    %v41 = vmul.f32 %v38, %v38
    %v42 = vmul.f32 %v39, %v39
    %vm43 = vcmask 64512
    %v44 = vsel %vm43, %v41, 0.0
    %v45 = vsel %vm43, %v42, 0.0
    %v46 = vadd.f32 %v44, %v45
    %v47 = vrot.slane %v46, 4
    %v48 = vadd.f32 %v46, %v47
    %v49 = vrot.slane %v48, 2
    %v50 = vadd.f32 %v48, %v49
    %v51 = vrot.slane %v50, 1
    %v52 = vadd.f32 %v50, %v51
    %v53 = vadd.f32 %v40, %v52
    %vm54 = vcmask 57344
    %55 = vst.msk [vmem:[#allocation2] sm:$0x1] %vm54, %v53
    // Predicated region
    $region14: #{actnorm_init.3} parent=1 // pred_check
      %p56 = pneg %p12
    $region15: #{actnorm_init.3} parent=1 // pred_check_branch
      %58 = sbr.rel (%p56) target = $region17
    $region16: #{actnorm_init.3} parent=1 // pred_region
      %v59 = vld [vmem:[#allocation2] sm:$0x1]
      %v60 = vmul.f32 %v59, 0.0625
      %v61 = vrsqrt.pop %v60
      %v62 = vmul.f32 %v60, %v61
      %vm63 = vcmp.eq.f32.partialorder %v60, inf
      %v64 = vsel %vm63, %v60, %v62
      %vm65 = vcmp.eq.f32.partialorder %v60, 0.0
      %v66 = vand.u32 %v60, 2147483648
      %v67 = vsel %vm65, %v66, %v64
      %v68 = vadd.f32 %v67, 1e-06
      %v69 = vrcp.pop %v68
      %v70 = vmul.f32 1.0, %v69
      %v71 = vlog2.pop %v70
      %v72 = vmul.f32 %v71, 0.6931472
      %73 = vst.msk [vmem:[#allocation3] sm:$0x1] %vm54, %v72
    $region17: #{actnorm_init.3} parent=1 // pred_fallthru
      _
    // Predicated region
    $region18: #{actnorm_init.3} parent=1 // pred_check
      _
    $region19: #{actnorm_init.3} parent=1 // pred_check_branch
      %75 = sbr.rel (0) target = $region21
    $region20: #{actnorm_init.3} parent=1 // pred_region
      %s77 = ssub.s32 16, 16
      %78 = vsyncadd [#allocation4], %s77
      %s80 = sshll.u32 [#allocation3], 4
      %s81 = int_to_ptr.vmem [resolvable:$true] %s80
      %83 = dma.vmem_to_hbm [thread:$0]  %s81, 16, %s2, [#allocation4]
    $region21: #{actnorm_init.3} parent=1 // pred_fallthru
      _
    // Predicated region
    $region22: #{actnorm_init.3} parent=1 // pred_check
      _
    $region23: #{actnorm_init.3} parent=1 // pred_check_branch
      %85 = sbr.rel (0) target = $region25
    $region24: #{actnorm_init.3} parent=1 // pred_region
      %86 = dma.done [#allocation4], 16
    $region25: #{actnorm_init.3} parent=1 // pred_fallthru
      _
    %87 = vsyncpa [#allocation4], 1

</llo_original>
